<compile_context>
chip_gen: v7x
topology: tpu7x:2x2x1
jax: 0.10.0
libtpu: 0.0.40
codegen_flags: <defaults>
</compile_context>

<pallas_src>
import jax
import jax.numpy as jnp
from jax.experimental import pallas as pl
from jax.experimental.pallas import tpu as pltpu


def _affine_prelu_kernel(x_ref, gamma_ref, beta_ref, alpha_ref, o_ref):
    # x_ref/o_ref: (Bt, Lt); gamma_ref/beta_ref: (1, Lt); alpha_ref: (1, 1) in SMEM.
    x = x_ref[...]
    alpha = alpha_ref[0, 0]
    g = gamma_ref[...].astype(jnp.float32)
    # Coefficients are computed once per (1, Lt) parameter row (negligible work)
    # and broadcast across the batch tile.
    coef_pos = (g + 1.0).astype(x.dtype)      # branch for x > 0
    coef_neg = (g + alpha).astype(x.dtype)    # branch for x <= 0
    coef = jnp.where(x > 0, coef_pos, coef_neg)
    o_ref[...] = (coef * x + beta_ref[...].astype(x.dtype)).astype(o_ref.dtype)


def _vmem_capacity_bytes():
    try:
        info = pltpu.get_tpu_info()
        for name in ("vmem_capacity_bytes", "vmem_size_bytes", "vmem_bytes"):
            v = getattr(info, name, None)
            if v:
                return int(v)
    except Exception:
        pass
    return 64 << 20  # conservative (v7x per-TensorCore) fallback


def _cdiv(a, b):
    return -(-a // b)


def _round_up(a, m):
    return _cdiv(a, m) * m


def affine_prelu(x, gamma, beta, alpha, *, target_block_bytes=None):
    """AffinePReLU forward.  x: (B, C, F); gamma, beta: (C, F); alpha: scalar."""
    B, C, F = x.shape
    assert gamma.shape == (C, F) and beta.shape == (C, F)
    N = C * F
    itemsize = jnp.dtype(x.dtype).itemsize
    sub = max(8, 32 // itemsize)  # sublane pack: 8 (f32), 16 (bf16), 32 (int8)

    # Per-generation budgets: v5e/v6e have 128 MiB physical VMEM -> big tiles &
    # high scoped limit; v7x has 64 MiB per TensorCore -> keep <= ~48 MiB.
    vmem_cap = _vmem_capacity_bytes()
    if vmem_cap >= (100 << 20):              # v5e / v6e
        default_budget, vmem_ceiling = 16 << 20, 100 << 20
    else:                                    # v7x (or unknown)
        default_budget, vmem_ceiling = 8 << 20, 48 << 20
    if target_block_bytes is None:
        target_block_bytes = default_budget

    # Flatten: batch on sublanes, channels*features on lanes (free reshape).
    xf = x.reshape(B, N)
    gf = gamma.reshape(1, N)
    bf = beta.reshape(1, N)

    # ---- lane (feature) tile: full extent if cheap, else a big 128-multiple ----
    if N <= 128 or N * min(B, sub) * itemsize <= target_block_bytes:
        Lt = N
    else:
        Lt = max(128, (target_block_bytes // (sub * itemsize)) // 128 * 128)
        Lt = min(Lt, (N // 128) * 128)
    n_l = _cdiv(N, Lt)

    # ---- batch (sublane) tile: fill the remaining byte budget -----------------
    cap_rows = max(1, target_block_bytes // (Lt * itemsize))
    if B <= sub or cap_rows >= B:
        Bt = B
    else:
        Bt = max(sub, (cap_rows // sub) * sub)
    n_b = _cdiv(B, Bt)

    # v7x has two TensorCores: make sure the parallel grid has >= 2 steps when
    # the whole array would otherwise land in a single block.
    if n_l == 1 and n_b == 1:
        if B > sub:
            Bt = _round_up(_cdiv(B, 2), sub)
            if Bt >= B:
                Bt = B
            n_b = _cdiv(B, Bt)
        elif N >= 256:
            Lt = _round_up(_cdiv(N, 2), 128)
            n_l = _cdiv(N, Lt)

    # Pad only the tiny parameter rows so every (1, Lt) param block is in range;
    # x itself is never padded (ragged tail blocks are masked by Pallas).
    Np = n_l * Lt
    if Np != N:
        gf = jnp.pad(gf, ((0, 0), (0, Np - N)))
        bf = jnp.pad(bf, ((0, 0), (0, Np - N)))

    # Grid order: feature tiles OUTER so gamma/beta blocks are reused across the
    # inner batch loop (fetched exactly once each).  With a single feature tile,
    # put batch outer so the parallel axis still has multiple steps.
    if n_l >= 2:
        grid = (n_l, n_b)
        x_map = lambda l, b: (b, l)
        p_map = lambda l, b: (0, l)
    else:
        grid = (n_b, n_l)
        x_map = lambda b, l: (b, l)
        p_map = lambda b, l: (0, l)

    alpha2d = jnp.asarray(alpha, dtype=jnp.float32).reshape(1, 1)

    # VMEM footprint: x-in, out, gamma, beta are each double-buffered.
    block_bytes = Bt * Lt * itemsize
    param_bytes = Lt * itemsize
    footprint = 2 * 2 * block_bytes + 2 * 2 * param_bytes
    vmem_limit = int(min(vmem_ceiling, max(2 * footprint, 32 << 20)))

    out = pl.pallas_call(
        _affine_prelu_kernel,
        out_shape=jax.ShapeDtypeStruct((B, N), x.dtype),
        grid_spec=pltpu.PrefetchScalarGridSpec(
            num_scalar_prefetch=0,
            grid=grid,
            in_specs=[
                pl.BlockSpec((Bt, Lt), x_map),
                pl.BlockSpec((1, Lt), p_map),
                pl.BlockSpec((1, Lt), p_map),
                pl.BlockSpec(memory_space=pltpu.SMEM),
            ],
            out_specs=pl.BlockSpec((Bt, Lt), x_map),
        ),
        compiler_params=pltpu.CompilerParams(
            dimension_semantics=("parallel", "parallel"),
            vmem_limit_bytes=vmem_limit,
        ),
    )(xf, gf, bf, alpha2d)

    return out.reshape(B, C, F)


def _reference(x, gamma, beta, alpha):
    relu = jnp.maximum(x, 0.0)
    prelu = relu + alpha * (x - relu)
    return gamma[None, :, :] * x + beta[None, :, :] + prelu


if __name__ == "__main__":
    key = jax.random.PRNGKey(0)
    k_x, k_g, k_b, k_x2, k_g2, k_b2 = jax.random.split(key, 6)

    # Primary small-shape check (module takes (Batch, Channels, Features)).
    B, C, F = 2, 4, 32
    x = jax.random.normal(k_x, (B, C, F), dtype=jnp.float32)
    # Module inits: gamma=ones, beta=zeros, alpha=0.25; perturb gamma/beta so
    # the affine path is genuinely exercised.
    gamma = 1.0 + 0.1 * jax.random.normal(k_g, (C, F), dtype=jnp.float32)
    beta = 0.05 * jax.random.normal(k_b, (C, F), dtype=jnp.float32)
    alpha = jnp.float32(0.25)

    out = jax.block_until_ready(affine_prelu(x, gamma, beta, alpha))
    ref = _reference(x, gamma, beta, alpha)
    assert out.shape == (B, C, F)
    assert jnp.allclose(out, ref, atol=1e-5, rtol=1e-5), "mismatch (aligned case)"

    # Unaligned / tiled case: exercises ragged feature-tile tails (no x padding,
    # no output slice) and the param-resident grid ordering, via a tiny budget.
    B2, C2, F2 = 16, 3, 100
    x2 = jax.random.normal(k_x2, (B2, C2, F2), dtype=jnp.float32)
    gamma2 = 1.0 + 0.1 * jax.random.normal(k_g2, (C2, F2), dtype=jnp.float32)
    beta2 = 0.05 * jax.random.normal(k_b2, (C2, F2), dtype=jnp.float32)

    out2 = jax.block_until_ready(
        affine_prelu(x2, gamma2, beta2, alpha, target_block_bytes=4096))
    ref2 = _reference(x2, gamma2, beta2, alpha)
    assert out2.shape == (B2, C2, F2)
    assert jnp.allclose(out2, ref2, atol=1e-5, rtol=1e-5), "mismatch (ragged case)"

    print("KERNEL_OK")
</pallas_src>

<mosaic_0001>
module attributes {stable_mosaic.version = 11 : i64} {
  func.func @_affine_prelu_kernel(%arg0: i32, %arg1: i32, %arg2: memref<2x128xf32, #tpu.memory_space<vmem>>, %arg3: memref<1x128xf32, #tpu.memory_space<vmem>>, %arg4: memref<1x128xf32, #tpu.memory_space<vmem>>, %arg5: memref<1x1xf32, #tpu.memory_space<smem>>, %arg6: memref<2x128xf32, #tpu.memory_space<vmem>>) attributes {dimension_semantics = [#tpu.dimension_semantics<parallel>, #tpu.dimension_semantics<parallel>], iteration_bounds = array<i64: 1, 1>, scalar_prefetch = 0 : i64, scratch_operands = 0 : i64, tpu.core_type = #tpu.core_type<tc>, window_params = [{transform_indices = @transform_0, window_bounds = array<i64: 2, 128>}, {transform_indices = @transform_1, window_bounds = array<i64: 1, 128>}, {transform_indices = @transform_2, window_bounds = array<i64: 1, 128>}, {transform_indices = @transform_3, window_bounds = array<i64: 1, 1>}, {transform_indices = @transform_4, window_bounds = array<i64: 2, 128>}]} {
    %c0 = arith.constant 0 : index
    %c0_0 = arith.constant 0 : index
    %0 = vector.load %arg2[%c0, %c0_0] : memref<2x128xf32, #tpu.memory_space<vmem>>, vector<2x128xf32>
    %c0_1 = arith.constant 0 : index
    %c0_2 = arith.constant 0 : index
    %1 = memref.load %arg5[%c0_1, %c0_2] : memref<1x1xf32, #tpu.memory_space<smem>>
    %c0_3 = arith.constant 0 : index
    %c0_4 = arith.constant 0 : index
    %2 = vector.load %arg3[%c0_3, %c0_4] : memref<1x128xf32, #tpu.memory_space<vmem>>, vector<1x128xf32>
    %cst = arith.constant 1.000000e+00 : f32
    %3 = vector.broadcast %cst : f32 to vector<1x128xf32>
    %4 = arith.addf %2, %3 : vector<1x128xf32>
    %5 = vector.broadcast %1 : f32 to vector<1x128xf32>
    %6 = arith.addf %2, %5 : vector<1x128xf32>
    %cst_5 = arith.constant 0.000000e+00 : f32
    %7 = vector.broadcast %cst_5 : f32 to vector<2x128xf32>
    %8 = arith.cmpf ogt, %0, %7 : vector<2x128xf32>
    %9 = vector.shape_cast %4 : vector<1x128xf32> to vector<1x128xf32>
    %10 = vector.broadcast %9 : vector<1x128xf32> to vector<2x128xf32>
    %11 = vector.shape_cast %6 : vector<1x128xf32> to vector<1x128xf32>
    %12 = vector.broadcast %11 : vector<1x128xf32> to vector<2x128xf32>
    %13 = arith.select %8, %10, %12 : vector<2x128xi1>, vector<2x128xf32>
    %14 = arith.mulf %13, %0 : vector<2x128xf32>
    %c0_6 = arith.constant 0 : index
    %c0_7 = arith.constant 0 : index
    %15 = vector.load %arg4[%c0_6, %c0_7] : memref<1x128xf32, #tpu.memory_space<vmem>>, vector<1x128xf32>
    %16 = vector.broadcast %15 : vector<1x128xf32> to vector<2x128xf32>
    %17 = arith.addf %14, %16 : vector<2x128xf32>
    %c0_8 = arith.constant 0 : index
    %c0_9 = arith.constant 0 : index
    %18 = vector.load %arg6[%c0_8, %c0_9] : memref<2x128xf32, #tpu.memory_space<vmem>>, vector<2x128xf32>
    tpu.vector_store %arg6[%c0_8, %c0_9], %17 {strides = array<i32>} : memref<2x128xf32, #tpu.memory_space<vmem>>, vector<2x128xf32>,
    return
  }
  func.func @transform_0(%arg0: i32, %arg1: i32) -> (i32, i32) {
    %c0_i32 = arith.constant 0 : i32
    return %arg0, %arg1 : i32, i32
  }
  func.func @transform_1(%arg0: i32, %arg1: i32) -> (i32, i32) {
    %c0_i32 = arith.constant 0 : i32
    %c0_i32_0 = arith.constant 0 : i32
    return %c0_i32, %arg1 : i32, i32
  }
  func.func @transform_2(%arg0: i32, %arg1: i32) -> (i32, i32) {
    %c0_i32 = arith.constant 0 : i32
    %c0_i32_0 = arith.constant 0 : i32
    return %c0_i32, %arg1 : i32, i32
  }
  func.func @transform_3(%arg0: i32, %arg1: i32) -> (i32, i32) {
    %c0_i32 = arith.constant 0 : i32
    %c0_i32_0 = arith.constant 0 : i32
    %c0_i32_1 = arith.constant 0 : i32
    return %c0_i32, %c0_i32_0 : i32, i32
  }
  func.func @transform_4(%arg0: i32, %arg1: i32) -> (i32, i32) {
    %c0_i32 = arith.constant 0 : i32
    return %arg0, %arg1 : i32, i32
  }
}

</mosaic_0001>

<llo_original>
// kernel: tpu_custom_call.1
$region0: #{tpu_custom_call.1}
  #allocation0 [shape = 'u32[]', space=smem, size = 0x4, offset = 0x4, fixed_abs, tag = 'smem constant byte address 0x4 - core index']
  #allocation1 [shape = 'u32[144,128]{1,0:T(1,128)}', space=vmem, size = 0x12000, scoped, tag = 'internal scratch']
  #allocation2 [shape = 'f32[1,1]{1,0:T(1,128)S(6)}', space=smem, size = 0x200, scoped, tag = 'scoped memory for tpu_custom_call.1']
  %s0 = inlined_call_operand.vmem [shape: f32[2,128], index: 0, kind: input, shape index: {}]
  %s1 = inlined_call_operand.vmem [shape: f32[1,128], index: 1, kind: input, shape index: {}]
  %s2 = inlined_call_operand.vmem [shape: f32[1,128], index: 2, kind: input, shape index: {}]
  %s3 = inlined_call_operand.<no memory space> [shape: f32[1,1], index: 3, kind: input, shape index: {}]
  %s4 = inlined_call_operand.hbm [shape: f32[2,128], index: 4, kind: output, shape index: {}]
  %s5 = sld [smem:[#allocation0]]
  $region26: #{tpu_custom_call.1} parent=0
    _
  %s7 = ssub.s32 1, %s5
  %s8 = scalar_select 0, %s7, %s5
  %9 = sst [smem:[#allocation2]] %s3
  $region1: #{tpu_custom_call.1} parent=0
    #allocation3 [shape = 'u8[1024]{0}', space=vmem, size = 0x400, scoped, tag = 'output window, operand 0, single buffered']
    #allocation4 [shape = 's32[1]{0}', space=sflag, size = 0x4, scoped, tag = 'scoped memory for tpu_custom_call.1']
    %10 = vsyncpa [#allocation4], 0
    // Predicated region
    $region2: #{tpu_custom_call.1} parent=1 // pred_check
      _
    $region3: #{tpu_custom_call.1} parent=1 // pred_check_branch
      %12 = sbr.rel (0) target = $region5
    $region4: #{tpu_custom_call.1} parent=1 // pred_region
      _
    $region5: #{tpu_custom_call.1} parent=1 // pred_fallthru
      _
    // Predicated region
    $region6: #{tpu_custom_call.1} parent=1 // pred_check
      _
    $region7: #{tpu_custom_call.1} parent=1 // pred_check_branch
      %14 = sbr.rel (0) target = $region9
    $region8: #{tpu_custom_call.1} parent=1 // pred_region
      _
    $region9: #{tpu_custom_call.1} parent=1 // pred_fallthru
      _
    // Predicated region
    $region10: #{tpu_custom_call.1} parent=1 // pred_check
      _
    $region11: #{tpu_custom_call.1} parent=1 // pred_check_branch
      %16 = sbr.rel (0) target = $region13
    $region12: #{tpu_custom_call.1} parent=1 // pred_region
      _
    $region13: #{tpu_custom_call.1} parent=1 // pred_fallthru
      _
    // Predicated region
    $region14: #{tpu_custom_call.1} parent=1 // pred_check
      _
    $region15: #{tpu_custom_call.1} parent=1 // pred_check_branch
      %18 = sbr.rel (0) target = $region17
    $region16: #{tpu_custom_call.1} parent=1 // pred_region
      _
    $region17: #{tpu_custom_call.1} parent=1 // pred_fallthru
      _
    %v19 = vld [vmem:[%s0] sm:$0x3]
    %s20 = sld [smem:[#allocation2]]
    %v21 = vld [vmem:[%s1] sm:$0x1]
    %v22 = vadd.f32 %v21, 1.0
    %v23 = vstv %s20
    %v24 = vadd.f32 %v21, %v23
    %vm25 = vcmp.gt.f32.partialorder %v19, 0.0
    %v27 = vlaneseq
    %v28 = vshrl.u32 %v27, 7
    %v29 = vsub.s32 0, %v28
    %v30 = vrot.slane %v22, %v29
    %v33 = vlaneseq
    %v34 = vshrl.u32 %v33, 7
    %v35 = vsub.s32 0, %v34
    %v36 = vrot.slane %v24, %v35
    %v38 = vsel %vm25, %v30, %v36
    %v39 = vmul.f32 %v38, %v19
    %v40 = vld [vmem:[%s2] sm:$0x1]
    %v42 = vlaneseq
    %v43 = vshrl.u32 %v42, 7
    %v44 = vsub.s32 0, %v43
    %v45 = vrot.slane %v40, %v44
    %v47 = vadd.f32 %v39, %v45
    %48 = vst [vmem:[#allocation3] sm:$0x3] %v47
    // Predicated region
    $region18: #{tpu_custom_call.1} parent=1 // pred_check
      _
    $region19: #{tpu_custom_call.1} parent=1 // pred_check_branch
      %50 = sbr.rel (0) target = $region21
    $region20: #{tpu_custom_call.1} parent=1 // pred_region
      %s52 = ssub.s32 32, 32
      %53 = vsyncadd [#allocation4], %s52
      %s55 = sshll.u32 [#allocation3], 4
      %s56 = int_to_ptr.vmem [resolvable:$true] %s55
      %58 = dma.vmem_to_hbm [thread:$0]  %s56, 32, %s4, [#allocation4]
    $region21: #{tpu_custom_call.1} parent=1 // pred_fallthru
      _
    // Predicated region
    $region22: #{tpu_custom_call.1} parent=1 // pred_check
      _
    $region23: #{tpu_custom_call.1} parent=1 // pred_check_branch
      %60 = sbr.rel (0) target = $region25
    $region24: #{tpu_custom_call.1} parent=1 // pred_region
      %61 = dma.done [#allocation4], 32
    $region25: #{tpu_custom_call.1} parent=1 // pred_fallthru
      _
    %62 = vsyncpa [#allocation4], 1

</llo_original>
